<compile_context>
chip_gen: v7x
topology: tpu7x:2x2x1
jax: 0.10.0
libtpu: 0.0.40
codegen_flags: <defaults>
</compile_context>

<pallas_src>
import numpy as np
import jax
import jax.numpy as jnp
from jax.experimental import pallas as pl
from jax.experimental.pallas import tpu as pltpu

EMBEDDING_SIZE = 256
SCALE = 1.0
TWO_PI = 2.0 * np.pi

# --- fused sincos constants (float32 Cody-Waite split of pi/2 + Cephes polys) ---
_TWO_OVER_PI = 0.6366197723675814
_PIO2_HI = 1.5703125                      # exactly representable
_PIO2_MID = 4.837512969970703125e-4       # exactly representable
_PIO2_LO = 7.549789948768648e-8           # residual
_SIN_C1 = -1.6666654611e-1
_SIN_C2 = 8.3321608736e-3
_SIN_C3 = -1.9515295891e-4
_COS_C1 = 4.166664568298827e-2
_COS_C2 = -1.388731625493765e-3
_COS_C3 = 2.443315711809948e-5


def _sincos(x):
    """Fused sin/cos sharing one range reduction.

    k = nearest integer of x*2/pi (quadrant), r = x - k*pi/2 in ~[-pi/4, pi/4],
    then both Cephes minimax polynomials are evaluated from the same r/r^2 and
    the quadrant selects/negates.  ~30 VPU ops/elem vs ~40 for independent
    jnp.sin + jnp.cos.
    """
    kf = jnp.floor(x * _TWO_OVER_PI + 0.5)        # round-half-up; either adjacent
    q = kf.astype(jnp.int32)                      # quadrant is fine at the boundary
    r = x - kf * _PIO2_HI                         # extended-precision reduction
    r = r - kf * _PIO2_MID
    r = r - kf * _PIO2_LO
    r2 = r * r
    sin_r = r + r * r2 * (_SIN_C1 + r2 * (_SIN_C2 + r2 * _SIN_C3))
    cos_r = 1.0 - 0.5 * r2 + r2 * r2 * (_COS_C1 + r2 * (_COS_C2 + r2 * _COS_C3))
    swap = (q & 1) != 0                           # odd quadrant: sin <-> cos
    s = jnp.where(swap, cos_r, sin_r)
    c = jnp.where(swap, sin_r, cos_r)
    s = jnp.where((q & 2) != 0, -s, s)            # quadrants 2,3: sin negative
    c = jnp.where(((q + 1) & 2) != 0, -c, c)      # quadrants 1,2: cos negative
    return s, c


def _gfp_kernel(x_ref, w_ref, o_ref):
    # x_ref: (TILE_N, 1) f32, w_ref: (1, E) f32, o_ref: (TILE_N, 2E) f32
    E = w_ref.shape[1]
    w2pi = w_ref[...] * TWO_PI            # (1, E) — E-wide scale, once per tile
    # VPU broadcast outer product; (tn,1)*(1,E) should lower to a per-vreg
    # lane-broadcast + vmul, not a materialized (tn,E) broadcast of x.
    proj = x_ref[...] * w2pi              # (TILE_N, E)
    s, c = _sincos(proj)                  # shared range reduction
    o_ref[:, :E] = s                      # lane-aligned (offset 0)   -> unmasked vst
    o_ref[:, E:] = c                      # lane-aligned (offset 256) -> unmasked vst


def gaussian_fourier_projection_time(x, W, *, tile_n=2048):
    """x: (B, 2) float32, W: (E,) float32  ->  (B, 4*E) float32."""
    batch = x.shape[0]
    E = W.shape[0]
    x_flat = x.reshape(-1).astype(jnp.float32)     # (N,), N = B*2
    N = x_flat.shape[0]

    # --- row tiling -------------------------------------------------------
    # Multiple-of-8 sublane tiles; >=2 grid steps for non-trivial N so both
    # v7x TensorCores shard the "parallel" axis; tile chosen so that for even
    # multiple-of-8 N we get n_pad == N (no post-kernel de-pad slice copy).
    n_round8 = ((N + 7) // 8) * 8
    g = pl.cdiv(n_round8, tile_n)
    if n_round8 >= 16:
        g = max(g, 2)
    tn = ((pl.cdiv(n_round8, g) + 7) // 8) * 8
    n_pad = g * tn

    if n_pad == N:
        x_col = x_flat.reshape(n_pad, 1)
    else:
        x_col = jnp.zeros((n_pad, 1), jnp.float32).at[:N, 0].set(x_flat)
    w_row = W.reshape(1, E).astype(jnp.float32)    # (1, E), resident across grid

    # --- scoped-VMEM guard --------------------------------------------------
    # Double-buffered: out tile (tn,2E) f32 + lane-padded x tile (tn,128) f32.
    est_vmem = 2 * (tn * 2 * E * 4 + tn * 128 * 4) + 8 * E * 4
    compiler_kwargs = dict(dimension_semantics=("parallel",))
    if est_vmem > 14 * 1024 * 1024:                # would overshoot v5e's 16 MiB default
        compiler_kwargs["vmem_limit_bytes"] = min(est_vmem + (4 << 20), 60 << 20)

    out = pl.pallas_call(
        _gfp_kernel,
        out_shape=jax.ShapeDtypeStruct((n_pad, 2 * E), jnp.float32),
        grid=(g,),
        in_specs=[
            pl.BlockSpec((tn, 1), lambda i: (i, 0)),      # x rows, tiled
            pl.BlockSpec((1, E), lambda i: (0, 0)),       # W resident
        ],
        out_specs=pl.BlockSpec((tn, 2 * E), lambda i: (i, 0)),
        compiler_params=pltpu.CompilerParams(**compiler_kwargs),
    )(x_col, w_row)

    if n_pad != N:
        out = out[:N]                                      # only when padding exists
    # (N, 2E) = (2B, 2E) -> (B, 4E): free contiguous view, matches PyTorch's
    # flatten + reshape((B, 256*4)) for input shape (B, 2).
    return out.reshape(batch, 4 * E)


if __name__ == "__main__":
    key = jax.random.PRNGKey(0)
    k_w, k_x = jax.random.split(key)

    # Deterministic "parameter": W = randn(256) * scale
    W = jax.random.normal(k_w, (EMBEDDING_SIZE,), dtype=jnp.float32) * SCALE

    # Small input consistent with the forward's final reshape: (batch, 2)
    batch = 2
    x = jax.random.normal(k_x, (batch, 2), dtype=jnp.float32)

    out = gaussian_fourier_projection_time(x, W)
    out = jax.block_until_ready(out)

    # Reference check (plain JAX)
    x_flat = x.reshape(-1)
    proj = x_flat[:, None] * (W[None, :] * TWO_PI)
    ref = jnp.concatenate([jnp.sin(proj), jnp.cos(proj)], axis=-1).reshape(
        batch, EMBEDDING_SIZE * 4)
    np.testing.assert_allclose(np.asarray(out), np.asarray(ref),
                               rtol=1e-5, atol=1e-5)
    assert out.shape == (batch, EMBEDDING_SIZE * 4)

    # Also exercise the multi-tile / no-padding path once for coverage.
    batch_big = 600                         # N = 1200 -> 2 tiles of 600, n_pad == N
    x_big = jax.random.normal(k_x, (batch_big, 2), dtype=jnp.float32)
    out_big = jax.block_until_ready(gaussian_fourier_projection_time(x_big, W))
    xb = x_big.reshape(-1)
    pb = xb[:, None] * (W[None, :] * TWO_PI)
    ref_big = jnp.concatenate([jnp.sin(pb), jnp.cos(pb)], axis=-1).reshape(
        batch_big, EMBEDDING_SIZE * 4)
    np.testing.assert_allclose(np.asarray(out_big), np.asarray(ref_big),
                               rtol=1e-5, atol=1e-5)

    print("KERNEL_OK")
</pallas_src>

<mosaic_0001>
module attributes {stable_mosaic.version = 11 : i64} {
  func.func @_gfp_kernel(%arg0: i32, %arg1: memref<8x1xf32, #tpu.memory_space<vmem>>, %arg2: memref<1x256xf32, #tpu.memory_space<vmem>>, %arg3: memref<8x512xf32, #tpu.memory_space<vmem>>) attributes {dimension_semantics = [#tpu.dimension_semantics<parallel>], iteration_bounds = array<i64: 1>, scalar_prefetch = 0 : i64, scratch_operands = 0 : i64, tpu.core_type = #tpu.core_type<tc>, window_params = [{transform_indices = @transform_0, window_bounds = array<i64: 8, 1>}, {pipeline_mode = #tpu.pipeline_mode<synchronous>, transform_indices = @transform_1, window_bounds = array<i64: 1, 256>}, {transform_indices = @transform_2, window_bounds = array<i64: 8, 512>}]} {
    %c0 = arith.constant 0 : index
    %c0_0 = arith.constant 0 : index
    %0 = vector.load %arg2[%c0, %c0_0] : memref<1x256xf32, #tpu.memory_space<vmem>>, vector<1x256xf32>
    %cst = arith.constant 6.28318548 : f32
    %1 = vector.broadcast %cst : f32 to vector<1x256xf32>
    %2 = arith.mulf %0, %1 : vector<1x256xf32>
    %c0_1 = arith.constant 0 : index
    %c0_2 = arith.constant 0 : index
    %3 = vector.load %arg1[%c0_1, %c0_2] : memref<8x1xf32, #tpu.memory_space<vmem>>, vector<8x1xf32>
    %4 = vector.broadcast %3 : vector<8x1xf32> to vector<8x256xf32>
    %5 = vector.broadcast %2 : vector<1x256xf32> to vector<8x256xf32>
    %6 = arith.mulf %4, %5 : vector<8x256xf32>
    %cst_3 = arith.constant 0.636619746 : f32
    %7 = vector.broadcast %cst_3 : f32 to vector<8x256xf32>
    %8 = arith.mulf %6, %7 : vector<8x256xf32>
    %cst_4 = arith.constant 5.000000e-01 : f32
    %9 = vector.broadcast %cst_4 : f32 to vector<8x256xf32>
    %10 = arith.addf %8, %9 : vector<8x256xf32>
    %11 = math.floor %10 : vector<8x256xf32>
    %12 = arith.fptosi %11 : vector<8x256xf32> to vector<8x256xi32>
    %cst_5 = arith.constant 1.5703125 : f32
    %13 = vector.broadcast %cst_5 : f32 to vector<8x256xf32>
    %14 = arith.mulf %11, %13 : vector<8x256xf32>
    %15 = arith.subf %6, %14 : vector<8x256xf32>
    %cst_6 = arith.constant 4.83751297E-4 : f32
    %16 = vector.broadcast %cst_6 : f32 to vector<8x256xf32>
    %17 = arith.mulf %11, %16 : vector<8x256xf32>
    %18 = arith.subf %15, %17 : vector<8x256xf32>
    %cst_7 = arith.constant 7.549790e-08 : f32
    %19 = vector.broadcast %cst_7 : f32 to vector<8x256xf32>
    %20 = arith.mulf %11, %19 : vector<8x256xf32>
    %21 = arith.subf %18, %20 : vector<8x256xf32>
    %22 = arith.mulf %21, %21 : vector<8x256xf32>
    %23 = arith.mulf %21, %22 : vector<8x256xf32>
    %cst_8 = arith.constant -1.95152956E-4 : f32
    %24 = vector.broadcast %cst_8 : f32 to vector<8x256xf32>
    %25 = arith.mulf %22, %24 : vector<8x256xf32>
    %cst_9 = arith.constant 0.00833216123 : f32
    %26 = vector.broadcast %cst_9 : f32 to vector<8x256xf32>
    %27 = arith.addf %26, %25 : vector<8x256xf32>
    %28 = arith.mulf %22, %27 : vector<8x256xf32>
    %cst_10 = arith.constant -0.166666552 : f32
    %29 = vector.broadcast %cst_10 : f32 to vector<8x256xf32>
    %30 = arith.addf %29, %28 : vector<8x256xf32>
    %31 = arith.mulf %23, %30 : vector<8x256xf32>
    %32 = arith.addf %21, %31 : vector<8x256xf32>
    %cst_11 = arith.constant 5.000000e-01 : f32
    %33 = vector.broadcast %cst_11 : f32 to vector<8x256xf32>
    %34 = arith.mulf %33, %22 : vector<8x256xf32>
    %cst_12 = arith.constant 1.000000e+00 : f32
    %35 = vector.broadcast %cst_12 : f32 to vector<8x256xf32>
    %36 = arith.subf %35, %34 : vector<8x256xf32>
    %37 = arith.mulf %22, %22 : vector<8x256xf32>
    %cst_13 = arith.constant 2.44331568E-5 : f32
    %38 = vector.broadcast %cst_13 : f32 to vector<8x256xf32>
    %39 = arith.mulf %22, %38 : vector<8x256xf32>
    %cst_14 = arith.constant -0.00138873165 : f32
    %40 = vector.broadcast %cst_14 : f32 to vector<8x256xf32>
    %41 = arith.addf %40, %39 : vector<8x256xf32>
    %42 = arith.mulf %22, %41 : vector<8x256xf32>
    %cst_15 = arith.constant 0.0416666456 : f32
    %43 = vector.broadcast %cst_15 : f32 to vector<8x256xf32>
    %44 = arith.addf %43, %42 : vector<8x256xf32>
    %45 = arith.mulf %37, %44 : vector<8x256xf32>
    %46 = arith.addf %36, %45 : vector<8x256xf32>
    %c1_i32 = arith.constant 1 : i32
    %47 = vector.broadcast %c1_i32 : i32 to vector<8x256xi32>
    %48 = arith.andi %12, %47 : vector<8x256xi32>
    %c0_i32 = arith.constant 0 : i32
    %49 = vector.broadcast %c0_i32 : i32 to vector<8x256xi32>
    %50 = arith.cmpi ne, %48, %49 : vector<8x256xi32>
    %51 = arith.select %50, %46, %32 : vector<8x256xi1>, vector<8x256xf32>
    %52 = arith.select %50, %32, %46 : vector<8x256xi1>, vector<8x256xf32>
    %c2_i32 = arith.constant 2 : i32
    %53 = vector.broadcast %c2_i32 : i32 to vector<8x256xi32>
    %54 = arith.andi %12, %53 : vector<8x256xi32>
    %c0_i32_16 = arith.constant 0 : i32
    %55 = vector.broadcast %c0_i32_16 : i32 to vector<8x256xi32>
    %56 = arith.cmpi ne, %54, %55 : vector<8x256xi32>
    %cst_17 = arith.constant 0.000000e+00 : f32
    %57 = vector.broadcast %cst_17 : f32 to vector<8x256xf32>
    %58 = arith.subf %57, %51 : vector<8x256xf32>
    %59 = arith.select %56, %58, %51 : vector<8x256xi1>, vector<8x256xf32>
    %c1_i32_18 = arith.constant 1 : i32
    %60 = vector.broadcast %c1_i32_18 : i32 to vector<8x256xi32>
    %61 = arith.addi %12, %60 : vector<8x256xi32>
    %c2_i32_19 = arith.constant 2 : i32
    %62 = vector.broadcast %c2_i32_19 : i32 to vector<8x256xi32>
    %63 = arith.andi %61, %62 : vector<8x256xi32>
    %c0_i32_20 = arith.constant 0 : i32
    %64 = vector.broadcast %c0_i32_20 : i32 to vector<8x256xi32>
    %65 = arith.cmpi ne, %63, %64 : vector<8x256xi32>
    %cst_21 = arith.constant 0.000000e+00 : f32
    %66 = vector.broadcast %cst_21 : f32 to vector<8x256xf32>
    %67 = arith.subf %66, %52 : vector<8x256xf32>
    %68 = arith.select %65, %67, %52 : vector<8x256xi1>, vector<8x256xf32>
    %c0_22 = arith.constant 0 : index
    %c0_23 = arith.constant 0 : index
    %69 = vector.load %arg3[%c0_22, %c0_23] : memref<8x512xf32, #tpu.memory_space<vmem>>, vector<8x256xf32>
    tpu.vector_store %arg3[%c0_22, %c0_23], %59 {strides = array<i32>} : memref<8x512xf32, #tpu.memory_space<vmem>>, vector<8x256xf32>,
    %c0_24 = arith.constant 0 : index
    %c256 = arith.constant 256 : index
    %70 = vector.load %arg3[%c0_24, %c256] : memref<8x512xf32, #tpu.memory_space<vmem>>, vector<8x256xf32>
    tpu.vector_store %arg3[%c0_24, %c256], %68 {strides = array<i32>} : memref<8x512xf32, #tpu.memory_space<vmem>>, vector<8x256xf32>,
    return
  }
  func.func @transform_0(%arg0: i32) -> (i32, i32) {
    %c0_i32 = arith.constant 0 : i32
    %c0_i32_0 = arith.constant 0 : i32
    return %arg0, %c0_i32 : i32, i32
  }
  func.func @transform_1(%arg0: i32) -> (i32, i32) {
    %c0_i32 = arith.constant 0 : i32
    %c0_i32_0 = arith.constant 0 : i32
    %c0_i32_1 = arith.constant 0 : i32
    return %c0_i32, %c0_i32_0 : i32, i32
  }
  func.func @transform_2(%arg0: i32) -> (i32, i32) {
    %c0_i32 = arith.constant 0 : i32
    %c0_i32_0 = arith.constant 0 : i32
    return %arg0, %c0_i32 : i32, i32
  }
}

</mosaic_0001>

<llo_original>
// kernel: tpu_custom_call.1
$region0: #{tpu_custom_call.1}
  #allocation0 [shape = 'u32[]', space=smem, size = 0x4, offset = 0x4, fixed_abs, tag = 'smem constant byte address 0x4 - core index']
  #allocation1 [shape = 'u32[144,128]{1,0:T(1,128)}', space=vmem, size = 0x12000, scoped, tag = 'internal scratch']
  %s0 = inlined_call_operand.vmem [shape: f32[8,1], index: 0, kind: input, shape index: {}]
  %s1 = inlined_call_operand.vmem [shape: f32[1,256], index: 1, kind: input, shape index: {}]
  %s2 = inlined_call_operand.hbm [shape: f32[8,512], index: 2, kind: output, shape index: {}]
  %s3 = sld [smem:[#allocation0]]
  $region18: #{tpu_custom_call.1} parent=0
    _
  %s5 = ssub.s32 1, %s3
  %s6 = scalar_select 0, %s5, %s3
  $region1: #{tpu_custom_call.1} parent=0
    #allocation2 [shape = 'u8[16384]{0}', space=vmem, size = 0x4000, scoped, tag = 'output window, operand 0, single buffered']
    #allocation3 [shape = 's32[1]{0}', space=sflag, size = 0x4, scoped, tag = 'scoped memory for tpu_custom_call.1']
    %7 = vsyncpa [#allocation3], 0
    // Predicated region
    $region2: #{tpu_custom_call.1} parent=1 // pred_check
      _
    $region3: #{tpu_custom_call.1} parent=1 // pred_check_branch
      %9 = sbr.rel (0) target = $region5
    $region4: #{tpu_custom_call.1} parent=1 // pred_region
      _
    $region5: #{tpu_custom_call.1} parent=1 // pred_fallthru
      _
    // Predicated region
    $region6: #{tpu_custom_call.1} parent=1 // pred_check
      _
    $region7: #{tpu_custom_call.1} parent=1 // pred_check_branch
      %11 = sbr.rel (0) target = $region9
    $region8: #{tpu_custom_call.1} parent=1 // pred_region
      _
    $region9: #{tpu_custom_call.1} parent=1 // pred_fallthru
      _
    %v12 = vld [vmem:[%s1] sm:$0x3]
    %v13 = vmul.f32 %v12, 6.2831855
    %v14 = vld [vmem:[%s0] sm:$0xff]
    %16 = vset.pattern.permute.xlu0 0
    %17 = vperm.xlu0 %16, %v14
    %v18 = vpop.permute.xlu0 %17
    %v21 = vlaneseq
    %v22 = vshrl.u32 %v21, 7
    %v23 = vsub.s32 0, %v22
    %v24 = vrot.slane %v13, %v23
    %v25 = vlaneseq
    %v26 = vshrl.u32 %v25, 7
    %v27 = vsub.s32 1, %v26
    %v28 = vrot.slane %v13, %v27
    %v31 = vmul.f32 %v18, %v24
    %v32 = vmul.f32 %v18, %v28
    %v33 = vmul.f32 %v31, 0.63661975
    %v34 = vmul.f32 %v32, 0.63661975
    %v35 = vadd.f32 %v33, 0.5
    %v36 = vadd.f32 %v34, 0.5
    %v37 = vfloor.f32 %v35
    %v38 = vfloor.f32 %v36
    %v39 = vcvt.f32.s32.to.zero.pseudo %v37
    %v40 = vcvt.f32.s32.to.zero.pseudo %v38
    %v41 = vmul.f32 %v37, 1.5703125
    %v42 = vmul.f32 %v38, 1.5703125
    %v43 = vsub.f32 %v31, %v41
    %v44 = vsub.f32 %v32, %v42
    %v45 = vmul.f32 %v37, 0.0004837513
    %v46 = vmul.f32 %v38, 0.0004837513
    %v47 = vsub.f32 %v43, %v45
    %v48 = vsub.f32 %v44, %v46
    %v49 = vmul.f32 %v37, 7.54979e-08
    %v50 = vmul.f32 %v38, 7.54979e-08
    %v51 = vsub.f32 %v47, %v49
    %v52 = vsub.f32 %v48, %v50
    %v53 = vmul.f32 %v51, %v51
    %v54 = vmul.f32 %v52, %v52
    %v55 = vmul.f32 %v51, %v53
    %v56 = vmul.f32 %v52, %v54
    %v57 = vmul.f32 %v53, -0.00019515296
    %v58 = vmul.f32 %v54, -0.00019515296
    %v59 = vadd.f32 %v57, 0.008332161
    %v60 = vadd.f32 %v58, 0.008332161
    %v61 = vmul.f32 %v53, %v59
    %v62 = vmul.f32 %v54, %v60
    %v63 = vadd.f32 %v61, -0.16666655
    %v64 = vadd.f32 %v62, -0.16666655
    %v65 = vmul.f32 %v55, %v63
    %v66 = vmul.f32 %v56, %v64
    %v67 = vadd.f32 %v51, %v65
    %v68 = vadd.f32 %v52, %v66
    %v69 = vmul.f32 %v53, 0.5
    %v70 = vmul.f32 %v54, 0.5
    %v71 = vsub.f32 1.0, %v69
    %v72 = vsub.f32 1.0, %v70
    %v73 = vmul.f32 %v53, %v53
    %v74 = vmul.f32 %v54, %v54
    %v75 = vmul.f32 %v53, 2.4433157e-05
    %v76 = vmul.f32 %v54, 2.4433157e-05
    %v77 = vadd.f32 %v75, -0.0013887316
    %v78 = vadd.f32 %v76, -0.0013887316
    %v79 = vmul.f32 %v53, %v77
    %v80 = vmul.f32 %v54, %v78
    %v81 = vadd.f32 %v79, 0.041666646
    %v82 = vadd.f32 %v80, 0.041666646
    %v83 = vmul.f32 %v73, %v81
    %v84 = vmul.f32 %v74, %v82
    %v85 = vadd.f32 %v71, %v83
    %v86 = vadd.f32 %v72, %v84
    %v87 = vand.u32 %v39, 1
    %v88 = vand.u32 %v40, 1
    %vm89 = vcmp.ne.s32.totalorder %v87, 0
    %vm90 = vcmp.ne.s32.totalorder %v88, 0
    %v91 = vsel %vm89, %v85, %v67
    %v92 = vsel %vm90, %v86, %v68
    %v93 = vsel %vm89, %v67, %v85
    %v94 = vsel %vm90, %v68, %v86
    %v95 = vand.u32 %v39, 2
    %v96 = vand.u32 %v40, 2
    %vm97 = vcmp.ne.s32.totalorder %v95, 0
    %vm98 = vcmp.ne.s32.totalorder %v96, 0
    %v99 = vsub.f32 0.0, %v91
    %v100 = vsub.f32 0.0, %v92
    %v101 = vsel %vm97, %v99, %v91
    %v102 = vsel %vm98, %v100, %v92
    %v103 = vadd.s32 %v39, 1
    %v104 = vadd.s32 %v40, 1
    %v105 = vand.u32 %v103, 2
    %v106 = vand.u32 %v104, 2
    %vm107 = vcmp.ne.s32.totalorder %v105, 0
    %vm108 = vcmp.ne.s32.totalorder %v106, 0
    %v109 = vsub.f32 0.0, %v93
    %v110 = vsub.f32 0.0, %v94
    %v111 = vsel %vm107, %v109, %v93
    %v112 = vsel %vm108, %v110, %v94
    %113 = vst [vmem:[#allocation2] sm:$0xff] %v101
    %114 = vst [vmem:[#allocation2 + $0x8] sm:$0xff] %v102
    %115 = vst [vmem:[#allocation2 + $0x10] sm:$0xff] %v111
    %116 = vst [vmem:[#allocation2 + $0x18] sm:$0xff] %v112
    // Predicated region
    $region10: #{tpu_custom_call.1} parent=1 // pred_check
      _
    $region11: #{tpu_custom_call.1} parent=1 // pred_check_branch
      %118 = sbr.rel (0) target = $region13
    $region12: #{tpu_custom_call.1} parent=1 // pred_region
      %s120 = ssub.s32 512, 512
      %121 = vsyncadd [#allocation3], %s120
      %s123 = sshll.u32 [#allocation2], 4
      %s124 = int_to_ptr.vmem [resolvable:$true] %s123
      %126 = dma.vmem_to_hbm [thread:$0]  %s124, 512, %s2, [#allocation3]
    $region13: #{tpu_custom_call.1} parent=1 // pred_fallthru
      _
    // Predicated region
    $region14: #{tpu_custom_call.1} parent=1 // pred_check
      _
    $region15: #{tpu_custom_call.1} parent=1 // pred_check_branch
      %128 = sbr.rel (0) target = $region17
    $region16: #{tpu_custom_call.1} parent=1 // pred_region
      %129 = dma.done [#allocation3], 512
    $region17: #{tpu_custom_call.1} parent=1 // pred_fallthru
      _
    %130 = vsyncpa [#allocation3], 1

</llo_original>
